<compile_context>
chip_gen: v7x
topology: tpu7x:2x2x1
jax: 0.10.0
libtpu: 0.0.40
codegen_flags: <defaults>
</compile_context>

<pallas_src>
import functools

import jax
import jax.numpy as jnp
import numpy as np
from jax.experimental import pallas as pl
from jax.experimental.pallas import tpu as pltpu


def _prediction_tile_kernel(out_ref, tgt_ref, loss_ref, *, tb, b_true):
    """out_ref:  VMEM (tb, C) logits tile
       tgt_ref:  VMEM (tb, C) gathered factorpred rows (pre-softmax) for this tile
       loss_ref: VMEM (1, 1)  per-tile partial sum of row losses
    """
    i = pl.program_id(0)

    o = out_ref[...].astype(jnp.float32)          # (tb, C)
    f = tgt_ref[...].astype(jnp.float32)          # (tb, C)

    # Fused soft-target cross entropy (no log_softmax / softmax materialization):
    #   row_loss = logsumexp(o - o_max) - sum(exp(f - f_max) * (o - o_max)) / sum(exp(f - f_max))
    o_max = jnp.max(o, axis=1, keepdims=True)     # (tb, 1)
    o_sh = o - o_max
    lse = jnp.log(jnp.sum(jnp.exp(o_sh), axis=1, keepdims=True))   # (tb, 1)

    f_max = jnp.max(f, axis=1, keepdims=True)
    f_exp = jnp.exp(f - f_max)                    # (tb, C)
    denom = jnp.sum(f_exp, axis=1, keepdims=True)                  # (tb, 1)
    num = jnp.sum(f_exp * o_sh, axis=1, keepdims=True)             # (tb, 1)

    # Exact divide (pl.reciprocal(approx=True) breaks the 1e-5 reference check).
    row_loss = lse - num / denom                  # (tb, 1)

    # Mask batch-padding rows in the (possibly ragged) last tile.
    rows = jax.lax.broadcasted_iota(jnp.int32, (tb, 1), 0)
    valid = (i * tb + rows) < b_true
    loss_ref[...] = jnp.sum(jnp.where(valid, row_loss, 0.0), axis=0, keepdims=True)


def prediction_loss(outputs, factorpred, smpid, *, tb=None):
    """Soft-target cross entropy:
        mean_b( sum_c( -log_softmax(outputs)[b, c] * softmax(factorpred[smpid[b]])[c] ) )

    outputs:    (B, C) float logits (f32 or bf16; in-kernel math is f32)
    factorpred: (N, C) float table (the nn.Parameter)
    smpid:      (B,)   integer sample ids
    """
    B, C = outputs.shape
    N, C2 = factorpred.shape
    assert C == C2

    # Clamp ids (OOB gathers are unchecked), then gather only the B needed rows in
    # the wrapper -> O(B*C) HBM traffic instead of touching the whole N x C table.
    smpid = jnp.clip(smpid.astype(jnp.int32), 0, N - 1)
    targets = jnp.take(factorpred, smpid, axis=0)             # (B, C)

    itemsize = jnp.dtype(outputs.dtype).itemsize

    # Pick tb: big enough to saturate the HBM<->VMEM pipeline, small enough that
    # 2 inputs x 2 pipeline buffers fit comfortably under the default scoped-VMEM
    # limit on every generation (v5e 16 MiB, v6e 32 MiB, v7x 32 MiB of 64 MiB/TC).
    if tb is None:
        vmem_budget = 8 * 1024 * 1024                          # double-buffered inputs
        tb_cap = max(8, (vmem_budget // (4 * C * itemsize)) // 8 * 8)
        tb = int(min(512, tb_cap))
    tb = max(8, (tb // 8) * 8)
    tb = min(tb, ((B + 7) // 8) * 8)                           # no tile bigger than the batch

    # Sublane-pad the batch to a multiple of tb; padded rows are masked in-kernel.
    B_pad = ((B + tb - 1) // tb) * tb
    if B_pad != B:
        outputs = jnp.pad(outputs, ((0, B_pad - B), (0, 0)))
        targets = jnp.pad(targets, ((0, B_pad - B), (0, 0)))
    num_tiles = B_pad // tb

    kernel = functools.partial(_prediction_tile_kernel, tb=tb, b_true=B)

    cost = pl.CostEstimate(
        flops=8 * B_pad * C,
        transcendentals=2 * B_pad * C + B_pad,
        bytes_accessed=2 * B_pad * C * itemsize + num_tiles * 4,
    )

    partials = pl.pallas_call(
        kernel,
        out_shape=jax.ShapeDtypeStruct((num_tiles, 1), jnp.float32),
        grid_spec=pltpu.PrefetchScalarGridSpec(
            num_scalar_prefetch=0,
            grid=(num_tiles,),
            in_specs=[
                pl.BlockSpec((tb, C), lambda i: (i, 0)),       # logits tile
                pl.BlockSpec((tb, C), lambda i: (i, 0)),       # gathered target tile
            ],
            out_specs=pl.BlockSpec((1, 1), lambda i: (i, 0)),  # per-tile partial sum
        ),
        compiler_params=pltpu.CompilerParams(
            dimension_semantics=("parallel",)),                # tiles independent -> both TCs on v7x
        cost_estimate=cost,
    )(outputs, targets)

    return jnp.sum(partials) / B


def prediction_loss_ref(outputs, factorpred, smpid):
    log_sm = jax.nn.log_softmax(outputs, axis=1)
    p = jax.nn.softmax(factorpred[smpid], axis=1)
    return jnp.mean(jnp.sum(-log_sm * p, axis=1))


if __name__ == "__main__":
    key = jax.random.PRNGKey(0)
    k1, k2, k3 = jax.random.split(key, 3)

    B = 8          # batch
    C = 10         # len(classes)
    N = 16         # len(trainset) + len(valset)  (synthetic, small)

    outputs = jax.random.normal(k1, (B, C), dtype=jnp.float32)
    # Module __init__ uses torch.ones((N, C)); add a small deterministic perturbation
    # so the gather + softmax path is actually exercised.
    factorpred = jnp.ones((N, C), jnp.float32) + 0.1 * jax.random.normal(k2, (N, C), jnp.float32)
    smpid = jax.random.randint(k3, (B,), 0, N, dtype=jnp.int32)

    loss = prediction_loss(outputs, factorpred, smpid)
    jax.block_until_ready(loss)
    ref = prediction_loss_ref(outputs, factorpred, smpid)
    np.testing.assert_allclose(np.asarray(loss), np.asarray(ref), rtol=1e-5, atol=1e-5)

    # Second case: ragged batch (exercises the in-kernel valid mask and padding).
    k4, k5, k6 = jax.random.split(jax.random.PRNGKey(1), 3)
    B2, C2n, N2 = 13, 10, 40
    outputs2 = jax.random.normal(k4, (B2, C2n), dtype=jnp.float32)
    factorpred2 = jnp.ones((N2, C2n), jnp.float32) + 0.1 * jax.random.normal(k5, (N2, C2n), jnp.float32)
    smpid2 = jax.random.randint(k6, (B2,), 0, N2, dtype=jnp.int32)
    loss2 = prediction_loss(outputs2, factorpred2, smpid2)
    jax.block_until_ready(loss2)
    ref2 = prediction_loss_ref(outputs2, factorpred2, smpid2)
    np.testing.assert_allclose(np.asarray(loss2), np.asarray(ref2), rtol=1e-5, atol=1e-5)

    print("KERNEL_OK")
</pallas_src>

<mosaic_0001>
module attributes {stable_mosaic.version = 11 : i64} {
  func.func @_prediction_tile_kernel(%arg0: i32, %arg1: memref<8x10xf32, #tpu.memory_space<vmem>>, %arg2: memref<8x10xf32, #tpu.memory_space<vmem>>, %arg3: memref<1x1xf32, #tpu.memory_space<vmem>>) attributes {dimension_semantics = [#tpu.dimension_semantics<parallel>], iteration_bounds = array<i64: 1>, scalar_prefetch = 0 : i64, scratch_operands = 0 : i64, tpu.core_type = #tpu.core_type<tc>, window_params = [{transform_indices = @transform_0, window_bounds = array<i64: 8, 10>}, {transform_indices = @transform_1, window_bounds = array<i64: 8, 10>}, {transform_indices = @transform_2, window_bounds = array<i64: 1, 1>}]} {
    %c0 = arith.constant 0 : index
    %c0_0 = arith.constant 0 : index
    %0 = vector.load %arg1[%c0, %c0_0] : memref<8x10xf32, #tpu.memory_space<vmem>>, vector<8x10xf32>
    %c0_1 = arith.constant 0 : index
    %c0_2 = arith.constant 0 : index
    %1 = vector.load %arg2[%c0_1, %c0_2] : memref<8x10xf32, #tpu.memory_space<vmem>>, vector<8x10xf32>
    %cst = arith.constant dense<0xFF800000> : vector<8xf32>
    %2 = vector.multi_reduction <maximumf>, %0, %cst [1] : vector<8x10xf32> to vector<8xf32>
    %3 = vector.shape_cast %2 : vector<8xf32> to vector<8x1xf32>
    %4 = vector.broadcast %3 : vector<8x1xf32> to vector<8x10xf32>
    %5 = arith.subf %0, %4 : vector<8x10xf32>
    %6 = math.exp %5 : vector<8x10xf32>
    %cst_3 = arith.constant dense<0.000000e+00> : vector<8xf32>
    %7 = vector.multi_reduction <add>, %6, %cst_3 [1] : vector<8x10xf32> to vector<8xf32>
    %8 = vector.shape_cast %7 : vector<8xf32> to vector<8x1xf32>
    %9 = math.log %8 : vector<8x1xf32>
    %cst_4 = arith.constant dense<0xFF800000> : vector<8xf32>
    %10 = vector.multi_reduction <maximumf>, %1, %cst_4 [1] : vector<8x10xf32> to vector<8xf32>
    %11 = vector.shape_cast %10 : vector<8xf32> to vector<8x1xf32>
    %12 = vector.broadcast %11 : vector<8x1xf32> to vector<8x10xf32>
    %13 = arith.subf %1, %12 : vector<8x10xf32>
    %14 = math.exp %13 : vector<8x10xf32>
    %cst_5 = arith.constant dense<0.000000e+00> : vector<8xf32>
    %15 = vector.multi_reduction <add>, %14, %cst_5 [1] : vector<8x10xf32> to vector<8xf32>
    %16 = vector.shape_cast %15 : vector<8xf32> to vector<8x1xf32>
    %17 = arith.mulf %14, %5 : vector<8x10xf32>
    %cst_6 = arith.constant dense<0.000000e+00> : vector<8xf32>
    %18 = vector.multi_reduction <add>, %17, %cst_6 [1] : vector<8x10xf32> to vector<8xf32>
    %19 = vector.shape_cast %18 : vector<8xf32> to vector<8x1xf32>
    %20 = arith.divf %19, %16 : vector<8x1xf32>
    %21 = arith.subf %9, %20 : vector<8x1xf32>
    %22 = tpu.iota {dimensions = array<i32: 0>} : vector<8x1xi32>
    %c8_i32 = arith.constant 8 : i32
    %23 = arith.muli %arg0, %c8_i32 : i32
    %24 = vector.broadcast %23 : i32 to vector<8x1xi32>
    %25 = arith.addi %24, %22 : vector<8x1xi32>
    %c8_i32_7 = arith.constant 8 : i32
    %26 = vector.broadcast %c8_i32_7 : i32 to vector<8x1xi32>
    %27 = arith.cmpi slt, %25, %26 : vector<8x1xi32>
    %cst_8 = arith.constant 0.000000e+00 : f32
    %28 = vector.broadcast %cst_8 : f32 to vector<8x1xf32>
    %29 = arith.select %27, %21, %28 : vector<8x1xi1>, vector<8x1xf32>
    %cst_9 = arith.constant dense<0.000000e+00> : vector<1xf32>
    %30 = vector.multi_reduction <add>, %29, %cst_9 [0] : vector<8x1xf32> to vector<1xf32>
    %31 = vector.shape_cast %30 : vector<1xf32> to vector<1x1xf32>
    %c0_10 = arith.constant 0 : index
    %c0_11 = arith.constant 0 : index
    %32 = vector.load %arg3[%c0_10, %c0_11] : memref<1x1xf32, #tpu.memory_space<vmem>>, vector<1x1xf32>
    tpu.vector_store %arg3[%c0_10, %c0_11], %31 {strides = array<i32>} : memref<1x1xf32, #tpu.memory_space<vmem>>, vector<1x1xf32>,
    return
  }
  func.func @transform_0(%arg0: i32) -> (i32, i32) {
    %c0_i32 = arith.constant 0 : i32
    %c0_i32_0 = arith.constant 0 : i32
    return %arg0, %c0_i32 : i32, i32
  }
  func.func @transform_1(%arg0: i32) -> (i32, i32) {
    %c0_i32 = arith.constant 0 : i32
    %c0_i32_0 = arith.constant 0 : i32
    return %arg0, %c0_i32 : i32, i32
  }
  func.func @transform_2(%arg0: i32) -> (i32, i32) {
    %c0_i32 = arith.constant 0 : i32
    %c0_i32_0 = arith.constant 0 : i32
    return %arg0, %c0_i32 : i32, i32
  }
}

</mosaic_0001>

<llo_original>
// kernel: tpu_custom_call.1
$region0: #{tpu_custom_call.1}
  #allocation0 [shape = 'u32[]', space=smem, size = 0x4, offset = 0x4, fixed_abs, tag = 'smem constant byte address 0x4 - core index']
  #allocation1 [shape = 'u32[144,128]{1,0:T(1,128)}', space=vmem, size = 0x12000, scoped, tag = 'internal scratch']
  %s0 = inlined_call_operand.hbm [shape: f32[8,10], index: 0, kind: input, shape index: {}]
  %s1 = inlined_call_operand.hbm [shape: f32[8,10], index: 1, kind: input, shape index: {}]
  %s2 = inlined_call_operand.hbm [shape: f32[1,1], index: 2, kind: output, shape index: {}]
  %s3 = sld [smem:[#allocation0]]
  $region26: #{tpu_custom_call.1} parent=0
    _
  %s5 = ssub.s32 1, %s3
  %s6 = scalar_select 0, %s5, %s3
  $region1: #{tpu_custom_call.1} parent=0
    #allocation2 [shape = 'u8[4096]{0}', space=vmem, size = 0x1000, scoped, tag = 'input window, operand 0, single buffered']
    #allocation3 [shape = 's32[1]{0}', space=sflag, size = 0x4, scoped, tag = 'scoped memory for tpu_custom_call.1']
    #allocation4 [shape = 's32[1]{0}', space=sflag, size = 0x4, scoped, tag = 'scoped memory for tpu_custom_call.1']
    #allocation5 [shape = 'u8[4096]{0}', space=vmem, size = 0x1000, scoped, tag = 'input window, operand 1, single buffered']
    #allocation6 [shape = 's32[1]{0}', space=sflag, size = 0x4, scoped, tag = 'scoped memory for tpu_custom_call.1']
    #allocation7 [shape = 'u8[512]{0}', space=vmem, size = 0x400, scoped, tag = 'output window, operand 0, single buffered']
    %7 = vsyncpa [#allocation3], 0
    %8 = vsyncpa [#allocation6], 0
    %9 = vsyncpa [#allocation4], 0
    // Predicated region
    $region2: #{tpu_custom_call.1} parent=1 // pred_check
      _
    $region3: #{tpu_custom_call.1} parent=1 // pred_check_branch
      %11 = sbr.rel (0) target = $region5
    $region4: #{tpu_custom_call.1} parent=1 // pred_region
      %s13 = ssub.s32 128, 128
      %14 = vsyncadd [#allocation3], %s13
      %s16 = sshll.u32 [#allocation2], 4
      %s17 = int_to_ptr.vmem [resolvable:$true] %s16
      %19 = dma.hbm_to_vmem [thread:$0]  %s0, 128, %s17, [#allocation3]
    $region5: #{tpu_custom_call.1} parent=1 // pred_fallthru
      _
    // Predicated region
    $region6: #{tpu_custom_call.1} parent=1 // pred_check
      _
    $region7: #{tpu_custom_call.1} parent=1 // pred_check_branch
      %21 = sbr.rel (0) target = $region9
    $region8: #{tpu_custom_call.1} parent=1 // pred_region
      %s23 = ssub.s32 128, 128
      %24 = vsyncadd [#allocation6], %s23
      %s26 = sshll.u32 [#allocation5], 4
      %s27 = int_to_ptr.vmem [resolvable:$true] %s26
      %29 = dma.hbm_to_vmem [thread:$0]  %s1, 128, %s27, [#allocation6]
    $region9: #{tpu_custom_call.1} parent=1 // pred_fallthru
      _
    // Predicated region
    $region10: #{tpu_custom_call.1} parent=1 // pred_check
      _
    $region11: #{tpu_custom_call.1} parent=1 // pred_check_branch
      %31 = sbr.rel (0) target = $region13
    $region12: #{tpu_custom_call.1} parent=1 // pred_region
      %32 = dma.done [#allocation3], 128
    $region13: #{tpu_custom_call.1} parent=1 // pred_fallthru
      _
    // Predicated region
    $region14: #{tpu_custom_call.1} parent=1 // pred_check
      _
    $region15: #{tpu_custom_call.1} parent=1 // pred_check_branch
      %34 = sbr.rel (0) target = $region17
    $region16: #{tpu_custom_call.1} parent=1 // pred_region
      %35 = dma.done [#allocation6], 128
    $region17: #{tpu_custom_call.1} parent=1 // pred_fallthru
      _
    %v36 = vld [vmem:[#allocation2] sm:$0xff]
    %v37 = vld [vmem:[#allocation5] sm:$0xff]
    %vm38 = vcmask 80896
    %v39 = vsel %vm38, %v36, -inf
    %40 = vmax.xlane.f32.xlu0 %v39
    %v41 = vpop.xlane.xlu0 %40
    %v42 = vsub.f32 %v36, %v41
    %v43 = vmul.f32 %v42, 1.442695
    %v44 = vpow.pop %v43
    %v45 = vsel %vm38, %v44, 0.0
    %46 = vadd.xlane.f32.xlu0 %v45
    %v47 = vpop.xlane.xlu0 %46
    %v48 = vlog2.pop %v47
    %v49 = vmul.f32 %v48, 0.6931472
    %v50 = vsel %vm38, %v37, -inf
    %51 = vmax.xlane.f32.xlu0 %v50
    %v52 = vpop.xlane.xlu0 %51
    %v53 = vsub.f32 %v37, %v52
    %v54 = vmul.f32 %v53, 1.442695
    %v55 = vpow.pop %v54
    %v56 = vsel %vm38, %v55, 0.0
    %57 = vadd.xlane.f32.xlu0 %v56
    %v58 = vpop.xlane.xlu0 %57
    %v59 = vmul.f32 %v55, %v42
    %v60 = vsel %vm38, %v59, 0.0
    %61 = vadd.xlane.f32.xlu0 %v60
    %v62 = vpop.xlane.xlu0 %61
    %v63 = vrcp.pop %v58
    %v64 = vmul.f32 %v62, %v63
    %v65 = vsub.f32 %v49, %v64
    %v66 = vlaneseq
    %v67 = vshrl.u32 %v66, 7
    %s68 = smul.u32 0, 8
    %v69 = vstv %s68
    %v70 = vadd.s32 %v69, %v67
    %vm71 = vcmp.lt.s32.totalorder %v70, 8
    %v72 = vsel %vm71, %v65, 0.0
    %v73 = vrot.slane %v72, 4
    %v74 = vadd.f32 %v72, %v73
    %v75 = vrot.slane %v74, 2
    %v76 = vadd.f32 %v74, %v75
    %v77 = vrot.slane %v76, 1
    %v78 = vadd.f32 %v76, %v77
    %vm79 = vcmask 0
    %80 = vst.msk [vmem:[#allocation7] sm:$0x1] %vm79, %v78
    // Predicated region
    $region18: #{tpu_custom_call.1} parent=1 // pred_check
      _
    $region19: #{tpu_custom_call.1} parent=1 // pred_check_branch
      %82 = sbr.rel (0) target = $region21
    $region20: #{tpu_custom_call.1} parent=1 // pred_region
      %s84 = ssub.s32 16, 16
      %85 = vsyncadd [#allocation4], %s84
      %s87 = sshll.u32 [#allocation7], 4
      %s88 = int_to_ptr.vmem [resolvable:$true] %s87
      %90 = dma.vmem_to_hbm [thread:$0]  %s88, 16, %s2, [#allocation4]
    $region21: #{tpu_custom_call.1} parent=1 // pred_fallthru
      _
    // Predicated region
    $region22: #{tpu_custom_call.1} parent=1 // pred_check
      _
    $region23: #{tpu_custom_call.1} parent=1 // pred_check_branch
      %92 = sbr.rel (0) target = $region25
    $region24: #{tpu_custom_call.1} parent=1 // pred_region
      %93 = dma.done [#allocation4], 16
    $region25: #{tpu_custom_call.1} parent=1 // pred_fallthru
      _
    %94 = vsyncpa [#allocation3], 1
    %95 = vsyncpa [#allocation6], 1
    %96 = vsyncpa [#allocation4], 1

</llo_original>
